<compile_context>
chip_gen: v7x
topology: tpu7x:2x2x1
jax: 0.10.0
libtpu: 0.0.40
codegen_flags: <defaults>
</compile_context>

<pallas_src>
import math
import functools

import numpy as np
import jax
import jax.numpy as jnp
from jax.experimental import pallas as pl
from jax.experimental.pallas import tpu as pltpu


def build_pe_table(d_model: int, max_seq_len: int = 80) -> np.ndarray:
    """Bit-matches the PyTorch __init__ double loop.
    NOTE: intentionally reproduces the module's non-standard exponents
    (2*i and 2*(i+1)); do not "fix" it against the textbook encoding."""
    pe = np.zeros((max_seq_len, d_model), dtype=np.float32)
    for pos in range(max_seq_len):
        for i in range(0, d_model, 2):
            pe[pos, i] = math.sin(pos / 10000 ** (2 * i / d_model))
            if i + 1 >= d_model:
                break
            pe[pos, i + 1] = math.cos(pos / 10000 ** (2 * (i + 1) / d_model))
    return pe


# ----------------------------- kernels --------------------------------------

def _pe_kernel_flat(x_ref, pe_ref, o_ref, *, scale):
    # x_ref/o_ref: (B, C) lane-dense chunk; pe_ref: (1, C). One fused VPU mul-add.
    x = x_ref[...].astype(jnp.float32)
    o_ref[...] = (x * scale + pe_ref[...]).astype(o_ref.dtype)


def _pe_kernel_rows(x_ref, pe_ref, o_ref, *, scale):
    # x_ref/o_ref: (TS, D) (batch dim squeezed); pe_ref: (TS, D).
    x = x_ref[...].astype(jnp.float32)
    o_ref[...] = (x * scale + pe_ref[...]).astype(o_ref.dtype)


# ----------------------------- wrapper ---------------------------------------

_TARGET_TILE_BYTES = 2 << 20  # ~2 MiB x-tile: near-roofline, fits double-buffered
                              # in the default scoped VMEM on v5e/v6e/v7x.


def _largest_divisor_leq(n: int, upper: int) -> int:
    upper = max(1, min(n, upper))
    for k in range(upper, 0, -1):
        if n % k == 0:
            return k
    return 1


def positional_encoder(x: jax.Array, pe_table: jax.Array, d_model: int) -> jax.Array:
    """x: (B, S, D); pe_table: (max_seq_len, D) float32."""
    B, S, D = x.shape
    assert D == d_model
    max_seq_len = pe_table.shape[0]
    assert S <= max_seq_len
    scale = math.sqrt(d_model)
    itemsize = jnp.dtype(x.dtype).itemsize

    flat_len = S * D
    if flat_len % 128 == 0:
        # ---- fast path: lane-dense flattened view -------------------------
        n128 = flat_len // 128
        k = _largest_divisor_leq(n128, _TARGET_TILE_BYTES // (itemsize * B * 128))
        C = k * 128
        grid = (flat_len // C,)

        x2 = x.reshape(B, flat_len)                    # contiguous -> free
        pe2 = pe_table.reshape(1, max_seq_len * D)     # contiguous -> free; no [:S] copy

        out = pl.pallas_call(
            functools.partial(_pe_kernel_flat, scale=scale),
            out_shape=jax.ShapeDtypeStruct((B, flat_len), x.dtype),
            grid=grid,
            in_specs=[
                pl.BlockSpec((B, C), lambda c: (0, c)),   # x chunk (full batch rows)
                pl.BlockSpec((1, C), lambda c: (0, c)),   # matching PE chunk
            ],
            out_specs=pl.BlockSpec((B, C), lambda c: (0, c)),
            compiler_params=pltpu.CompilerParams(
                dimension_semantics=("parallel",)),
        )(x2, pe2)
        return out.reshape(B, S, D)

    # ---- fallback: (s_tile, batch) grid, full-D blocks ---------------------
    if S % 8 == 0:
        n8 = S // 8
        k = _largest_divisor_leq(n8, _TARGET_TILE_BYTES // (itemsize * D * 8))
        TS = k * 8
        pe_in = pe_table                                  # whole table, indexed by s
        pe_spec = pl.BlockSpec((TS, D), lambda s, b: (s, 0))
    else:
        TS = S                                            # full-dim escape hatch
        pe_in = pe_table[:S, :]                           # tiny copy; needed so the
        pe_spec = pl.BlockSpec((S, D), lambda s, b: (0, 0))  # pe block has full dims

    grid = (S // TS, B)  # S outer, B inner -> PE block stays resident across batch
    return pl.pallas_call(
        functools.partial(_pe_kernel_rows, scale=scale),
        out_shape=jax.ShapeDtypeStruct((B, S, D), x.dtype),
        grid=grid,
        in_specs=[
            pl.BlockSpec((pl.Squeezed(), TS, D), lambda s, b: (b, s, 0)),
            pe_spec,
        ],
        out_specs=pl.BlockSpec((pl.Squeezed(), TS, D), lambda s, b: (b, s, 0)),
        compiler_params=pltpu.CompilerParams(
            dimension_semantics=("parallel", "parallel")),
    )(x, pe_in)


# ----------------------------- reference -------------------------------------

def positional_encoder_ref(x_np: np.ndarray, pe_np: np.ndarray, d_model: int) -> np.ndarray:
    S = x_np.shape[1]
    return x_np * math.sqrt(d_model) + pe_np[None, :S, :]


if __name__ == "__main__":
    key = jax.random.PRNGKey(0)

    # Main case (matches the module defaults): fast lane-dense path.
    d_model, max_seq_len, batch, seq_len = 32, 80, 2, 8
    pe_np = build_pe_table(d_model, max_seq_len)
    pe_table = jnp.asarray(pe_np)
    x = jax.random.normal(key, (batch, seq_len, d_model), dtype=jnp.float32)

    out = jax.block_until_ready(positional_encoder(x, pe_table, d_model))
    np.testing.assert_allclose(
        np.asarray(out), positional_encoder_ref(np.asarray(x), pe_np, d_model),
        rtol=1e-6, atol=1e-6)

    # Fallback path, S multiple of 8 but S*D not a multiple of 128.
    d2, s2, b2 = 24, 8, 3
    pe2_np = build_pe_table(d2, max_seq_len)
    x2 = jax.random.normal(jax.random.PRNGKey(1), (b2, s2, d2), dtype=jnp.float32)
    out2 = jax.block_until_ready(positional_encoder(x2, jnp.asarray(pe2_np), d2))
    np.testing.assert_allclose(
        np.asarray(out2), positional_encoder_ref(np.asarray(x2), pe2_np, d2),
        rtol=1e-6, atol=1e-6)

    # Fallback path, ragged S (full-dim escape hatch).
    d3, s3, b3 = 24, 5, 2
    x3 = jax.random.normal(jax.random.PRNGKey(2), (b3, s3, d3), dtype=jnp.float32)
    out3 = jax.block_until_ready(positional_encoder(x3, jnp.asarray(pe2_np), d3))
    np.testing.assert_allclose(
        np.asarray(out3), positional_encoder_ref(np.asarray(x3), pe2_np, d3),
        rtol=1e-6, atol=1e-6)

    print("KERNEL_OK")
</pallas_src>

<mosaic_0001>
module attributes {stable_mosaic.version = 11 : i64} {
  func.func @_pe_kernel_flat(%arg0: i32, %arg1: memref<2x256xf32, #tpu.memory_space<vmem>>, %arg2: memref<1x256xf32, #tpu.memory_space<vmem>>, %arg3: memref<2x256xf32, #tpu.memory_space<vmem>>) attributes {dimension_semantics = [#tpu.dimension_semantics<parallel>], iteration_bounds = array<i64: 1>, scalar_prefetch = 0 : i64, scratch_operands = 0 : i64, tpu.core_type = #tpu.core_type<tc>, window_params = [{transform_indices = @transform_0, window_bounds = array<i64: 2, 256>}, {transform_indices = @transform_1, window_bounds = array<i64: 1, 256>}, {transform_indices = @transform_2, window_bounds = array<i64: 2, 256>}]} {
    %c0 = arith.constant 0 : index
    %c0_0 = arith.constant 0 : index
    %0 = vector.load %arg1[%c0, %c0_0] : memref<2x256xf32, #tpu.memory_space<vmem>>, vector<2x256xf32>
    %cst = arith.constant 5.65685415 : f32
    %1 = vector.broadcast %cst : f32 to vector<2x256xf32>
    %2 = arith.mulf %0, %1 : vector<2x256xf32>
    %c0_1 = arith.constant 0 : index
    %c0_2 = arith.constant 0 : index
    %3 = vector.load %arg2[%c0_1, %c0_2] : memref<1x256xf32, #tpu.memory_space<vmem>>, vector<1x256xf32>
    %4 = vector.broadcast %3 : vector<1x256xf32> to vector<2x256xf32>
    %5 = arith.addf %2, %4 : vector<2x256xf32>
    %c0_3 = arith.constant 0 : index
    %c0_4 = arith.constant 0 : index
    %6 = vector.load %arg3[%c0_3, %c0_4] : memref<2x256xf32, #tpu.memory_space<vmem>>, vector<2x256xf32>
    tpu.vector_store %arg3[%c0_3, %c0_4], %5 {strides = array<i32>} : memref<2x256xf32, #tpu.memory_space<vmem>>, vector<2x256xf32>,
    return
  }
  func.func @transform_0(%arg0: i32) -> (i32, i32) {
    %c0_i32 = arith.constant 0 : i32
    %c0_i32_0 = arith.constant 0 : i32
    return %c0_i32, %arg0 : i32, i32
  }
  func.func @transform_1(%arg0: i32) -> (i32, i32) {
    %c0_i32 = arith.constant 0 : i32
    %c0_i32_0 = arith.constant 0 : i32
    return %c0_i32, %arg0 : i32, i32
  }
  func.func @transform_2(%arg0: i32) -> (i32, i32) {
    %c0_i32 = arith.constant 0 : i32
    %c0_i32_0 = arith.constant 0 : i32
    return %c0_i32, %arg0 : i32, i32
  }
}

</mosaic_0001>

<llo_original>
// kernel: tpu_custom_call.1
$region0: #{tpu_custom_call.1}
  #allocation0 [shape = 'u32[]', space=smem, size = 0x4, offset = 0x4, fixed_abs, tag = 'smem constant byte address 0x4 - core index']
  #allocation1 [shape = 'u32[144,128]{1,0:T(1,128)}', space=vmem, size = 0x12000, scoped, tag = 'internal scratch']
  %s0 = inlined_call_operand.hbm [shape: f32[2,256], index: 0, kind: input, shape index: {}]
  %s1 = inlined_call_operand.hbm [shape: f32[1,2560], index: 1, kind: input, shape index: {}]
  %s2 = inlined_call_operand.hbm [shape: f32[2,256], index: 2, kind: output, shape index: {}]
  %s3 = sld [smem:[#allocation0]]
  $region26: #{tpu_custom_call.1} parent=0
    _
  %s5 = ssub.s32 1, %s3
  %s6 = scalar_select 0, %s5, %s3
  $region1: #{tpu_custom_call.1} parent=0
    #allocation2 [shape = 'u8[2048]{0}', space=vmem, size = 0x800, scoped, tag = 'input window, operand 0, single buffered']
    #allocation3 [shape = 's32[1]{0}', space=sflag, size = 0x4, scoped, tag = 'scoped memory for tpu_custom_call.1']
    #allocation4 [shape = 's32[1]{0}', space=sflag, size = 0x4, scoped, tag = 'scoped memory for tpu_custom_call.1']
    #allocation5 [shape = 'u8[1024]{0}', space=vmem, size = 0x400, scoped, tag = 'input window, operand 1, single buffered']
    #allocation6 [shape = 's32[1]{0}', space=sflag, size = 0x4, scoped, tag = 'scoped memory for tpu_custom_call.1']
    #allocation7 [shape = 'u8[2048]{0}', space=vmem, size = 0x800, scoped, tag = 'output window, operand 0, single buffered']
    %7 = vsyncpa [#allocation3], 0
    %8 = vsyncpa [#allocation6], 0
    %9 = vsyncpa [#allocation4], 0
    // Predicated region
    $region2: #{tpu_custom_call.1} parent=1 // pred_check
      _
    $region3: #{tpu_custom_call.1} parent=1 // pred_check_branch
      %11 = sbr.rel (0) target = $region5
    $region4: #{tpu_custom_call.1} parent=1 // pred_region
      %s13 = ssub.s32 64, 64
      %14 = vsyncadd [#allocation3], %s13
      %s16 = sshll.u32 [#allocation2], 4
      %s17 = int_to_ptr.vmem [resolvable:$true] %s16
      %19 = dma.hbm_to_vmem [thread:$0]  %s0, 64, %s17, [#allocation3]
    $region5: #{tpu_custom_call.1} parent=1 // pred_fallthru
      _
    // Predicated region
    $region6: #{tpu_custom_call.1} parent=1 // pred_check
      _
    $region7: #{tpu_custom_call.1} parent=1 // pred_check_branch
      %21 = sbr.rel (0) target = $region9
    $region8: #{tpu_custom_call.1} parent=1 // pred_region
      %s23 = ssub.s32 32, 32
      %24 = vsyncadd [#allocation6], %s23
      %s26 = sshll.u32 [#allocation5], 4
      %s27 = int_to_ptr.vmem [resolvable:$true] %s26
      %29 = dma.hbm_to_vmem [thread:$0]  %s1, 32, %s27, [#allocation6]
    $region9: #{tpu_custom_call.1} parent=1 // pred_fallthru
      _
    // Predicated region
    $region10: #{tpu_custom_call.1} parent=1 // pred_check
      _
    $region11: #{tpu_custom_call.1} parent=1 // pred_check_branch
      %31 = sbr.rel (0) target = $region13
    $region12: #{tpu_custom_call.1} parent=1 // pred_region
      %32 = dma.done [#allocation3], 64
    $region13: #{tpu_custom_call.1} parent=1 // pred_fallthru
      _
    // Predicated region
    $region14: #{tpu_custom_call.1} parent=1 // pred_check
      _
    $region15: #{tpu_custom_call.1} parent=1 // pred_check_branch
      %34 = sbr.rel (0) target = $region17
    $region16: #{tpu_custom_call.1} parent=1 // pred_region
      %35 = dma.done [#allocation6], 32
    $region17: #{tpu_custom_call.1} parent=1 // pred_fallthru
      _
    %v36 = vld [vmem:[#allocation2] sm:$0xf]
    %v37 = vmul.f32 %v36, 5.656854
    %v38 = vld [vmem:[#allocation5] sm:$0x3]
    %v40 = vlaneseq
    %v41 = vshrl.u32 %v40, 7
    %v42 = vsub.s32 0, %v41
    %v43 = vrot.slane %v38, %v42
    %v44 = vlaneseq
    %v45 = vshrl.u32 %v44, 7
    %v46 = vsub.s32 1, %v45
    %v47 = vrot.slane %v38, %v46
    %v48 = vcombine.low %v43, %v47
    %v50 = vunpack.c.l.s4 1983009808
    %v51 = vunpack.c.0.s8 %v50
    %v52 = vlaneseq
    %v53 = vshrl.u32 %v52, 7
    %v54 = vsub.s32 %v51, %v53
    %v55 = vrot.slane %v48, %v54
    %v57 = vadd.f32 %v37, %v55
    %58 = vst [vmem:[#allocation7] sm:$0xf] %v57
    // Predicated region
    $region18: #{tpu_custom_call.1} parent=1 // pred_check
      _
    $region19: #{tpu_custom_call.1} parent=1 // pred_check_branch
      %60 = sbr.rel (0) target = $region21
    $region20: #{tpu_custom_call.1} parent=1 // pred_region
      %s62 = ssub.s32 64, 64
      %63 = vsyncadd [#allocation4], %s62
      %s65 = sshll.u32 [#allocation7], 4
      %s66 = int_to_ptr.vmem [resolvable:$true] %s65
      %68 = dma.vmem_to_hbm [thread:$0]  %s66, 64, %s2, [#allocation4]
    $region21: #{tpu_custom_call.1} parent=1 // pred_fallthru
      _
    // Predicated region
    $region22: #{tpu_custom_call.1} parent=1 // pred_check
      _
    $region23: #{tpu_custom_call.1} parent=1 // pred_check_branch
      %70 = sbr.rel (0) target = $region25
    $region24: #{tpu_custom_call.1} parent=1 // pred_region
      %71 = dma.done [#allocation4], 64
    $region25: #{tpu_custom_call.1} parent=1 // pred_fallthru
      _
    %72 = vsyncpa [#allocation3], 1
    %73 = vsyncpa [#allocation6], 1
    %74 = vsyncpa [#allocation4], 1

</llo_original>
